<compile_context>
chip_gen: v7x
topology: tpu7x:2x2x1
jax: 0.10.0
libtpu: 0.0.40
codegen_flags: <defaults>
</compile_context>

<pallas_src>
import functools

import jax
import jax.numpy as jnp
from jax.experimental import pallas as pl
from jax.experimental.pallas import tpu as pltpu

IGNORE_INDEX = 255
KL_WEIGHT = 0.1
BCE_WEIGHT = 1.0


def _vmem_budgets():
    """Generation-aware (working-set budget, scoped-VMEM limit) in bytes."""
    try:
        info = pltpu.get_tpu_info()
        cap = int(getattr(info, "vmem_capacity_bytes", 0)) or 64 * 1024 * 1024
    except Exception:
        cap = 64 * 1024 * 1024  # conservative fallback: v7x per-TC VMEM
    budget = min(cap // 3, 48 * 1024 * 1024)        # block-sizing working set
    limit = min((3 * cap) // 4, 96 * 1024 * 1024)   # compiler scoped-VMEM limit
    return budget, limit


def _pick_tile(c, hw, vmem_budget_bytes, max_tile=65536):
    """Lane tile along H*W: as big as the VMEM budget allows (amortizes the
    ~0.35us/step overhead), a multiple of 128 lanes, capped at max_tile."""
    cpad = ((c + 7) // 8) * 8                 # sublane padding of (C, TILE_P) tiles
    per_lane_bytes = 24 * cpad * 4            # double-buffered inputs + temporaries
    t = max(128, vmem_budget_bytes // per_lane_bytes)
    t = min(t, max_tile)
    if t >= hw:
        return hw                             # whole spatial extent in one block
    return max(128, (t // 128) * 128)


def _tf_loss_kernel(p1_ref, p2_ref, gt_ref, kl_ref, ce_ref, *, hw, n_inner,
                    ignore_index):
    o_idx = pl.program_id(1)        # spatial split (parallel, megacore)
    p_idx = pl.program_id(2)        # spatial tile within split (arbitrary)
    tile_idx = o_idx * n_inner + p_idx

    # Tiny (1,1,1) output blocks are VMEM-resident across the arbitrary axis:
    # zero them on the first spatial tile of each (batch, split) pair.
    @pl.when(p_idx == 0)
    def _():
        kl_ref[...] = jnp.zeros_like(kl_ref)
        ce_ref[...] = jnp.zeros_like(ce_ref)

    p1 = p1_ref[...].astype(jnp.float32)      # (1, C, TP)  channels on sublanes
    p2 = p2_ref[...].astype(jnp.float32)      # (1, C, TP)
    gt = gt_ref[...]                          # (1, 1, TP)  int32

    _, c, tp = p1.shape

    # Validity mask for the (possibly partial) last spatial tile.
    lane = jax.lax.broadcasted_iota(jnp.int32, (1, 1, tp), 2)
    lane_mask = (tile_idx * tp + lane) < hw                   # (1, 1, TP) bool

    # Per-lane channel maxima (sublane reductions).
    m1 = jnp.max(p1, axis=1, keepdims=True)
    m2 = jnp.max(p2, axis=1, keepdims=True)

    # Two full-block exp passes only.
    e_h1 = jnp.exp((p1 - m1) * 0.5)           # exp(0.5*(p1 - m1))
    e2 = jnp.exp(p2 - m2)                     # exp(p2 - m2)
    e1 = e_h1 * e_h1                          # exp(p1 - m1)
    u = e_h1 * e2                             # unnormalized mixture weights

    s1 = jnp.sum(e1, axis=1, keepdims=True)   # (1,1,TP)
    s2 = jnp.sum(e2, axis=1, keepdims=True)
    sm = jnp.sum(u, axis=1, keepdims=True)
    t_qp2 = jnp.sum(u * p2, axis=1, keepdims=True)            # Sm * sum_c q*p2

    # sum_c q*(2*lsm - ls1 - ls2) == sum_c(q*p2) + LSE1 + LSE2 - 2*LSE_m
    #   with LSE1 = m1 + log s1, LSE2 = m2 + log s2, LSE_m = 0.5*m1 + m2 + log sm.
    kl_lane = (t_qp2 / sm
               + jnp.log(s1) + jnp.log(s2) - m2 - 2.0 * jnp.log(sm))
    kl_lane = jnp.where(lane_mask, kl_lane, 0.0)

    # Cross-entropy on pred1 with ignore_index: nll = LSE1 - p1[gt].
    classes = jax.lax.broadcasted_iota(jnp.int32, (1, c, tp), 1)
    onehot = (classes == gt).astype(jnp.float32)
    tgt_logit = jnp.sum(p1 * onehot, axis=1, keepdims=True)   # p1[gt] per lane
    nll = (m1 + jnp.log(s1)) - tgt_logit
    valid = jnp.logical_and(gt != ignore_index, lane_mask)
    nll = jnp.where(valid, nll, 0.0)

    # In-kernel cross-lane reduction; accumulate into the resident (1,1,1) blocks.
    kl_ref[...] += jnp.sum(kl_lane, axis=2, keepdims=True)
    ce_ref[...] += jnp.sum(nll, axis=2, keepdims=True)


def tf_loss(pred1, pred2, gt, kl_weight=KL_WEIGHT, bce_weight=BCE_WEIGHT, *,
            tile_p=None):
    n, c, h, w = pred1.shape
    hw = h * w

    # Free reshapes only — no transpose, no extra HBM copies.
    # TODO(synk): if upstream can emit bf16 logits, feed them directly here
    # (kernel upcasts to f32); halves HBM traffic on v5e/v6e.
    p1 = pred1.reshape(n, c, hw)
    p2 = pred2.reshape(n, c, hw)
    g = gt.reshape(n, 1, hw).astype(jnp.int32)

    vmem_budget, vmem_limit = _vmem_budgets()
    if tile_p is None:
        tile_p = _pick_tile(c, hw, vmem_budget)
    num_tiles = -(-hw // tile_p)

    # Split the spatial range into a second "parallel" axis (when it divides
    # evenly) so both TensorCores on v7x get work even with n == 1.
    outer = 2 if (num_tiles >= 2 and num_tiles % 2 == 0) else 1
    inner = num_tiles // outer
    grid = (n, outer, inner)

    kernel = functools.partial(_tf_loss_kernel, hw=hw, n_inner=inner,
                               ignore_index=IGNORE_INDEX)

    in_map = lambda b, o, p: (b, 0, o * inner + p)
    out_map = lambda b, o, p: (b * outer + o, 0, 0)
    out_sds = jax.ShapeDtypeStruct((n * outer, 1, 1), jnp.float32)

    kl_part, ce_part = pl.pallas_call(
        kernel,
        out_shape=(out_sds, out_sds),
        grid_spec=pltpu.PrefetchScalarGridSpec(
            num_scalar_prefetch=0,
            grid=grid,
            in_specs=[
                pl.BlockSpec((1, c, tile_p), in_map),
                pl.BlockSpec((1, c, tile_p), in_map),
                pl.BlockSpec((1, 1, tile_p), in_map),
            ],
            out_specs=[
                pl.BlockSpec((1, 1, 1), out_map),
                pl.BlockSpec((1, 1, 1), out_map),
            ],
        ),
        compiler_params=pltpu.CompilerParams(
            dimension_semantics=("parallel", "parallel", "arbitrary"),
            vmem_limit_bytes=vmem_limit,
        ),
    )(p1, p2, g)

    denom = float(n * h * w)
    loss_kl = jnp.sum(kl_part) / denom
    # mmseg CrossEntropyLoss default (avg_non_ignore=False): average over ALL pixels.
    # TODO(synk): divide by the valid-pixel count instead for avg_non_ignore=True.
    loss_ce = jnp.sum(ce_part) / denom
    return kl_weight * loss_kl + bce_weight * loss_ce


def tf_loss_ref(pred1, pred2, gt, kl_weight=KL_WEIGHT, bce_weight=BCE_WEIGHT):
    n, c, h, w = pred1.shape
    p1 = jnp.transpose(pred1, (0, 2, 3, 1)).reshape(-1, c)
    p2 = jnp.transpose(pred2, (0, 2, 3, 1)).reshape(-1, c)
    g = gt.reshape(-1)
    ls1 = jax.nn.log_softmax(p1, axis=-1)
    ls2 = jax.nn.log_softmax(p2, axis=-1)
    lsm = jax.nn.log_softmax(0.5 * p1 + p2, axis=-1)   # matches the torch module
    mp = jnp.exp(lsm)
    loss_kl = jnp.sum(mp * (2.0 * lsm - ls1 - ls2)) / (n * h * w)
    valid = g != IGNORE_INDEX
    gi = jnp.clip(g, 0, c - 1)
    nll = -jnp.take_along_axis(ls1, gi[:, None], axis=-1)[:, 0]
    loss_ce = jnp.sum(jnp.where(valid, nll, 0.0)) / (n * h * w)
    return kl_weight * loss_kl + bce_weight * loss_ce


if __name__ == "__main__":
    key = jax.random.PRNGKey(0)

    # Test 1: small canonical shape, single spatial tile.
    k1, k2, k3 = jax.random.split(key, 3)
    n, c, h, w = 2, 4, 16, 16
    pred1 = jax.random.normal(k1, (n, c, h, w), dtype=jnp.float32)
    pred2 = jax.random.normal(k2, (n, c, h, w), dtype=jnp.float32)
    gt = jax.random.randint(k3, (n, 1, h, w), 0, c).astype(jnp.int32)
    gt = gt.at[0, 0, 0, :4].set(IGNORE_INDEX)          # exercise ignore_index
    loss = jax.block_until_ready(tf_loss(pred1, pred2, gt))
    ref = jax.block_until_ready(tf_loss_ref(pred1, pred2, gt))
    assert jnp.allclose(loss, ref, rtol=1e-4, atol=1e-5), (loss, ref)

    # Test 2: multi-tile path with a partial last tile and the 2-way spatial
    # split (forced small tile_p to exercise masking + split at small shapes).
    k4, k5, k6 = jax.random.split(jax.random.PRNGKey(1), 3)
    n2, c2, h2, w2 = 1, 4, 30, 30
    q1 = jax.random.normal(k4, (n2, c2, h2, w2), dtype=jnp.float32)
    q2 = jax.random.normal(k5, (n2, c2, h2, w2), dtype=jnp.float32)
    g2 = jax.random.randint(k6, (n2, 1, h2, w2), 0, c2).astype(jnp.int32)
    g2 = g2.at[0, 0, 5, :7].set(IGNORE_INDEX)
    loss2 = jax.block_until_ready(tf_loss(q1, q2, g2, tile_p=256))
    ref2 = jax.block_until_ready(tf_loss_ref(q1, q2, g2))
    assert jnp.allclose(loss2, ref2, rtol=1e-4, atol=1e-5), (loss2, ref2)

    print("KERNEL_OK")
</pallas_src>

<mosaic_0001>
module attributes {stable_mosaic.version = 11 : i64} {
  func.func @_tf_loss_kernel(%arg0: i32, %arg1: i32, %arg2: i32, %arg3: memref<1x4x256xf32, #tpu.memory_space<vmem>>, %arg4: memref<1x4x256xf32, #tpu.memory_space<vmem>>, %arg5: memref<1x1x256xi32, #tpu.memory_space<vmem>>, %arg6: memref<1x1x1xf32, #tpu.memory_space<vmem>>, %arg7: memref<1x1x1xf32, #tpu.memory_space<vmem>>) attributes {dimension_semantics = [#tpu.dimension_semantics<parallel>, #tpu.dimension_semantics<parallel>, #tpu.dimension_semantics<arbitrary>], iteration_bounds = array<i64: 2, 1, 1>, scalar_prefetch = 0 : i64, scratch_operands = 0 : i64, tpu.core_type = #tpu.core_type<tc>, window_params = [{transform_indices = @transform_0, window_bounds = array<i64: 1, 4, 256>}, {transform_indices = @transform_1, window_bounds = array<i64: 1, 4, 256>}, {transform_indices = @transform_2, window_bounds = array<i64: 1, 1, 256>}, {transform_indices = @transform_3, window_bounds = array<i64: 1, 1, 1>}, {transform_indices = @transform_4, window_bounds = array<i64: 1, 1, 1>}]} {
    %c1_i32 = arith.constant 1 : i32
    %0 = arith.muli %arg1, %c1_i32 : i32
    %1 = arith.addi %0, %arg2 : i32
    %c0_i32 = arith.constant 0 : i32
    %2 = arith.cmpi eq, %arg2, %c0_i32 : i32
    %3 = arith.extui %2 : i1 to i32
    %c0_i32_0 = arith.constant 0 : i32
    %4 = arith.cmpi ne, %3, %c0_i32_0 : i32
    scf.if %4 {
      %cst_34 = arith.constant 0.000000e+00 : f32
      %75 = vector.broadcast %cst_34 : f32 to vector<1x1x1xf32>
      %c0_35 = arith.constant 0 : index
      %c0_36 = arith.constant 0 : index
      %c0_37 = arith.constant 0 : index
      %76 = vector.load %arg6[%c0_35, %c0_36, %c0_37] : memref<1x1x1xf32, #tpu.memory_space<vmem>>, vector<1x1x1xf32>
      tpu.vector_store %arg6[%c0_35, %c0_36, %c0_37], %75 {strides = array<i32>} : memref<1x1x1xf32, #tpu.memory_space<vmem>>, vector<1x1x1xf32>,
      %cst_38 = arith.constant 0.000000e+00 : f32
      %77 = vector.broadcast %cst_38 : f32 to vector<1x1x1xf32>
      %c0_39 = arith.constant 0 : index
      %c0_40 = arith.constant 0 : index
      %c0_41 = arith.constant 0 : index
      %78 = vector.load %arg7[%c0_39, %c0_40, %c0_41] : memref<1x1x1xf32, #tpu.memory_space<vmem>>, vector<1x1x1xf32>
      tpu.vector_store %arg7[%c0_39, %c0_40, %c0_41], %77 {strides = array<i32>} : memref<1x1x1xf32, #tpu.memory_space<vmem>>, vector<1x1x1xf32>,
    } else {
    }
    %c0 = arith.constant 0 : index
    %c0_1 = arith.constant 0 : index
    %c0_2 = arith.constant 0 : index
    %5 = vector.load %arg3[%c0, %c0_1, %c0_2] : memref<1x4x256xf32, #tpu.memory_space<vmem>>, vector<1x4x256xf32>
    %c0_3 = arith.constant 0 : index
    %c0_4 = arith.constant 0 : index
    %c0_5 = arith.constant 0 : index
    %6 = vector.load %arg4[%c0_3, %c0_4, %c0_5] : memref<1x4x256xf32, #tpu.memory_space<vmem>>, vector<1x4x256xf32>
    %c0_6 = arith.constant 0 : index
    %c0_7 = arith.constant 0 : index
    %c0_8 = arith.constant 0 : index
    %7 = vector.load %arg5[%c0_6, %c0_7, %c0_8] : memref<1x1x256xi32, #tpu.memory_space<vmem>>, vector<1x1x256xi32>
    %8 = tpu.iota {dimensions = array<i32: 2>} : vector<1x1x256xi32>
    %c256_i32 = arith.constant 256 : i32
    %9 = arith.muli %1, %c256_i32 : i32
    %10 = vector.broadcast %9 : i32 to vector<1x1x256xi32>
    %11 = arith.addi %10, %8 : vector<1x1x256xi32>
    %c256_i32_9 = arith.constant 256 : i32
    %12 = vector.broadcast %c256_i32_9 : i32 to vector<1x1x256xi32>
    %13 = arith.cmpi slt, %11, %12 : vector<1x1x256xi32>
    %cst = arith.constant dense<0xFF800000> : vector<1x256xf32>
    %14 = vector.multi_reduction <maximumf>, %5, %cst [1] : vector<1x4x256xf32> to vector<1x256xf32>
    %15 = vector.shape_cast %14 : vector<1x256xf32> to vector<1x1x256xf32>
    %cst_10 = arith.constant dense<0xFF800000> : vector<1x256xf32>
    %16 = vector.multi_reduction <maximumf>, %6, %cst_10 [1] : vector<1x4x256xf32> to vector<1x256xf32>
    %17 = vector.shape_cast %16 : vector<1x256xf32> to vector<1x1x256xf32>
    %18 = vector.broadcast %15 : vector<1x1x256xf32> to vector<1x4x256xf32>
    %19 = arith.subf %5, %18 : vector<1x4x256xf32>
    %cst_11 = arith.constant 5.000000e-01 : f32
    %20 = vector.broadcast %cst_11 : f32 to vector<1x4x256xf32>
    %21 = arith.mulf %19, %20 : vector<1x4x256xf32>
    %22 = math.exp %21 : vector<1x4x256xf32>
    %23 = vector.broadcast %17 : vector<1x1x256xf32> to vector<1x4x256xf32>
    %24 = arith.subf %6, %23 : vector<1x4x256xf32>
    %25 = math.exp %24 : vector<1x4x256xf32>
    %26 = arith.mulf %22, %22 : vector<1x4x256xf32>
    %27 = arith.mulf %22, %25 : vector<1x4x256xf32>
    %cst_12 = arith.constant dense<0.000000e+00> : vector<1x256xf32>
    %28 = vector.multi_reduction <add>, %26, %cst_12 [1] : vector<1x4x256xf32> to vector<1x256xf32>
    %29 = vector.shape_cast %28 : vector<1x256xf32> to vector<1x1x256xf32>
    %cst_13 = arith.constant dense<0.000000e+00> : vector<1x256xf32>
    %30 = vector.multi_reduction <add>, %25, %cst_13 [1] : vector<1x4x256xf32> to vector<1x256xf32>
    %31 = vector.shape_cast %30 : vector<1x256xf32> to vector<1x1x256xf32>
    %cst_14 = arith.constant dense<0.000000e+00> : vector<1x256xf32>
    %32 = vector.multi_reduction <add>, %27, %cst_14 [1] : vector<1x4x256xf32> to vector<1x256xf32>
    %33 = vector.shape_cast %32 : vector<1x256xf32> to vector<1x1x256xf32>
    %34 = arith.mulf %27, %6 : vector<1x4x256xf32>
    %cst_15 = arith.constant dense<0.000000e+00> : vector<1x256xf32>
    %35 = vector.multi_reduction <add>, %34, %cst_15 [1] : vector<1x4x256xf32> to vector<1x256xf32>
    %36 = vector.shape_cast %35 : vector<1x256xf32> to vector<1x1x256xf32>
    %37 = arith.divf %36, %33 : vector<1x1x256xf32>
    %38 = math.log %29 : vector<1x1x256xf32>
    %39 = arith.addf %37, %38 : vector<1x1x256xf32>
    %40 = math.log %31 : vector<1x1x256xf32>
    %41 = arith.addf %39, %40 : vector<1x1x256xf32>
    %42 = arith.subf %41, %17 : vector<1x1x256xf32>
    %43 = math.log %33 : vector<1x1x256xf32>
    %cst_16 = arith.constant 2.000000e+00 : f32
    %44 = vector.broadcast %cst_16 : f32 to vector<1x1x256xf32>
    %45 = arith.mulf %44, %43 : vector<1x1x256xf32>
    %46 = arith.subf %42, %45 : vector<1x1x256xf32>
    %cst_17 = arith.constant 0.000000e+00 : f32
    %47 = vector.broadcast %cst_17 : f32 to vector<1x1x256xf32>
    %48 = arith.select %13, %46, %47 : vector<1x1x256xi1>, vector<1x1x256xf32>
    %49 = tpu.iota {dimensions = array<i32: 1>} : vector<1x4x256xi32>
    %50 = vector.broadcast %7 : vector<1x1x256xi32> to vector<1x4x256xi32>
    %51 = arith.cmpi eq, %49, %50 : vector<1x4x256xi32>
    %52 = arith.extui %51 : vector<1x4x256xi1> to vector<1x4x256xi32>
    %53 = arith.sitofp %52 : vector<1x4x256xi32> to vector<1x4x256xf32>
    %54 = arith.mulf %5, %53 : vector<1x4x256xf32>
    %cst_18 = arith.constant dense<0.000000e+00> : vector<1x256xf32>
    %55 = vector.multi_reduction <add>, %54, %cst_18 [1] : vector<1x4x256xf32> to vector<1x256xf32>
    %56 = vector.shape_cast %55 : vector<1x256xf32> to vector<1x1x256xf32>
    %57 = math.log %29 : vector<1x1x256xf32>
    %58 = arith.addf %15, %57 : vector<1x1x256xf32>
    %59 = arith.subf %58, %56 : vector<1x1x256xf32>
    %c255_i32 = arith.constant 255 : i32
    %60 = vector.broadcast %c255_i32 : i32 to vector<1x1x256xi32>
    %61 = arith.cmpi ne, %7, %60 : vector<1x1x256xi32>
    %62 = arith.andi %61, %13 : vector<1x1x256xi1>
    %cst_19 = arith.constant 0.000000e+00 : f32
    %63 = vector.broadcast %cst_19 : f32 to vector<1x1x256xf32>
    %64 = arith.select %62, %59, %63 : vector<1x1x256xi1>, vector<1x1x256xf32>
    %c0_20 = arith.constant 0 : index
    %c0_21 = arith.constant 0 : index
    %c0_22 = arith.constant 0 : index
    %65 = vector.load %arg6[%c0_20, %c0_21, %c0_22] : memref<1x1x1xf32, #tpu.memory_space<vmem>>, vector<1x1x1xf32>
    %cst_23 = arith.constant dense<0.000000e+00> : vector<1x1xf32>
    %66 = vector.multi_reduction <add>, %48, %cst_23 [2] : vector<1x1x256xf32> to vector<1x1xf32>
    %67 = vector.shape_cast %66 : vector<1x1xf32> to vector<1x1x1xf32>
    %68 = arith.addf %65, %67 : vector<1x1x1xf32>
    %c0_24 = arith.constant 0 : index
    %c0_25 = arith.constant 0 : index
    %c0_26 = arith.constant 0 : index
    %69 = vector.load %arg6[%c0_24, %c0_25, %c0_26] : memref<1x1x1xf32, #tpu.memory_space<vmem>>, vector<1x1x1xf32>
    tpu.vector_store %arg6[%c0_24, %c0_25, %c0_26], %68 {strides = array<i32>} : memref<1x1x1xf32, #tpu.memory_space<vmem>>, vector<1x1x1xf32>,
    %c0_27 = arith.constant 0 : index
    %c0_28 = arith.constant 0 : index
    %c0_29 = arith.constant 0 : index
    %70 = vector.load %arg7[%c0_27, %c0_28, %c0_29] : memref<1x1x1xf32, #tpu.memory_space<vmem>>, vector<1x1x1xf32>
    %cst_30 = arith.constant dense<0.000000e+00> : vector<1x1xf32>
    %71 = vector.multi_reduction <add>, %64, %cst_30 [2] : vector<1x1x256xf32> to vector<1x1xf32>
    %72 = vector.shape_cast %71 : vector<1x1xf32> to vector<1x1x1xf32>
    %73 = arith.addf %70, %72 : vector<1x1x1xf32>
    %c0_31 = arith.constant 0 : index
    %c0_32 = arith.constant 0 : index
    %c0_33 = arith.constant 0 : index
    %74 = vector.load %arg7[%c0_31, %c0_32, %c0_33] : memref<1x1x1xf32, #tpu.memory_space<vmem>>, vector<1x1x1xf32>
    tpu.vector_store %arg7[%c0_31, %c0_32, %c0_33], %73 {strides = array<i32>} : memref<1x1x1xf32, #tpu.memory_space<vmem>>, vector<1x1x1xf32>,
    return
  }
  func.func @transform_0(%arg0: i32, %arg1: i32, %arg2: i32) -> (i32, i32, i32) {
    %c1_i32 = arith.constant 1 : i32
    %0 = arith.muli %arg1, %c1_i32 : i32
    %1 = arith.addi %0, %arg2 : i32
    %c0_i32 = arith.constant 0 : i32
    %c0_i32_0 = arith.constant 0 : i32
    return %arg0, %c0_i32, %1 : i32, i32, i32
  }
  func.func @transform_1(%arg0: i32, %arg1: i32, %arg2: i32) -> (i32, i32, i32) {
    %c1_i32 = arith.constant 1 : i32
    %0 = arith.muli %arg1, %c1_i32 : i32
    %1 = arith.addi %0, %arg2 : i32
    %c0_i32 = arith.constant 0 : i32
    %c0_i32_0 = arith.constant 0 : i32
    return %arg0, %c0_i32, %1 : i32, i32, i32
  }
  func.func @transform_2(%arg0: i32, %arg1: i32, %arg2: i32) -> (i32, i32, i32) {
    %c1_i32 = arith.constant 1 : i32
    %0 = arith.muli %arg1, %c1_i32 : i32
    %1 = arith.addi %0, %arg2 : i32
    %c0_i32 = arith.constant 0 : i32
    %c0_i32_0 = arith.constant 0 : i32
    return %arg0, %c0_i32, %1 : i32, i32, i32
  }
  func.func @transform_3(%arg0: i32, %arg1: i32, %arg2: i32) -> (i32, i32, i32) {
    %c1_i32 = arith.constant 1 : i32
    %0 = arith.muli %arg0, %c1_i32 : i32
    %1 = arith.addi %0, %arg1 : i32
    %c0_i32 = arith.constant 0 : i32
    %c0_i32_0 = arith.constant 0 : i32
    %c0_i32_1 = arith.constant 0 : i32
    return %1, %c0_i32, %c0_i32_0 : i32, i32, i32
  }
  func.func @transform_4(%arg0: i32, %arg1: i32, %arg2: i32) -> (i32, i32, i32) {
    %c1_i32 = arith.constant 1 : i32
    %0 = arith.muli %arg0, %c1_i32 : i32
    %1 = arith.addi %0, %arg1 : i32
    %c0_i32 = arith.constant 0 : i32
    %c0_i32_0 = arith.constant 0 : i32
    %c0_i32_1 = arith.constant 0 : i32
    return %1, %c0_i32, %c0_i32_0 : i32, i32, i32
  }
}

</mosaic_0001>

<llo_original>
// kernel: tpu_custom_call.1
$region0: #{tpu_custom_call.1}
  #allocation0 [shape = 'u32[]', space=smem, size = 0x4, offset = 0x4, fixed_abs, tag = 'smem constant byte address 0x4 - core index']
  #allocation1 [shape = 'u32[144,128]{1,0:T(1,128)}', space=vmem, size = 0x12000, scoped, tag = 'internal scratch']
  %s0 = inlined_call_operand.hbm [shape: f32[2,4,256], index: 0, kind: input, shape index: {}]
  %s1 = inlined_call_operand.hbm [shape: f32[2,4,256], index: 1, kind: input, shape index: {}]
  %s2 = inlined_call_operand.vmem [shape: s32[2,1,256], index: 2, kind: input, shape index: {}]
  %s3 = inlined_call_operand.vmem [shape: f32[2,1,1], index: 3, kind: output, shape index: {0}]
  %s4 = inlined_call_operand.vmem [shape: f32[2,1,1], index: 4, kind: output, shape index: {1}]
  %5 = xla_tuple %s3, %s4
  %s6 = sld [smem:[#allocation0]]
  $region65: #{tpu_custom_call.1} parent=0
    _
  %s8 = ssub.s32 1, %s6
  %s9 = scalar_select 0, %s8, %s6
  $region1: #{tpu_custom_call.1} parent=0
    #allocation2 [shape = 'u8[8192]{0}', space=vmem, size = 0x2000, scoped, tag = 'input window, operand 0']
    #allocation3 [shape = 's32[2]{0}', space=sflag, size = 0x8, scoped, tag = 'scoped memory for tpu_custom_call.1']
    #allocation4 [shape = 'u8[8192]{0}', space=vmem, size = 0x2000, scoped, tag = 'input window, operand 1']
    #allocation5 [shape = 's32[2]{0}', space=sflag, size = 0x8, scoped, tag = 'scoped memory for tpu_custom_call.1']
    %10 = vsyncpa [#allocation3], 0
    %s11 = scalar_lea.sflag [#allocation3], 1
    %12 = vsyncpa %s11, 0
    %13 = vsyncpa [#allocation5], 0
    %s14 = scalar_lea.sflag [#allocation5], 1
    %15 = vsyncpa %s14, 0
    loop: start=0, step=1, limit=4
    $region2: #{tpu_custom_call.1} parent=1 // loop_pre_header
      _
    $region3: #{tpu_custom_call.1} parent=1 // loop_header
      %s17 = sphi 0, %s21
      %p18 = scmp.ge.s32.totalorder %s17, 4
      %s24 = sphi 0, %s43
      %s25 = sphi 0, %s39
      %s26 = sphi 0, %s35
      %s27 = sphi 0, %s24
      %s28 = sphi 0, %s25
      %s29 = sphi 0, %s26
      %s30 = sphi 0, %s27
      %s31 = sphi 0, %s28
      %s32 = sphi 0, %s29
      %s50 = sphi 0, %s52
      %s53 = sphi 0, %s50
      %s54 = sphi 0, %s53
      %s70 = sphi 0, %s54
      %s80 = sphi 0, %s82
      %s83 = sphi 0, %s80
      %s84 = sphi 0, %s83
      %s100 = sphi 0, %s84
      %s110 = sphi 0, %s112
      %s113 = sphi 0, %s110
      %s114 = sphi 0, %s113
      %s130 = sphi 0, %s114
      %s138 = sphi 0, %s140
      %s141 = sphi 0, %s138
      %s142 = sphi 0, %s141
      %s158 = sphi 0, %s142
      %s166 = sphi 0, %s168
      %s169 = sphi 0, %s166
      %s170 = sphi 0, %s169
      %s186 = sphi 0, %s170
    $region4: #{tpu_custom_call.1} parent=1 // loop_header_branch
      %20 = sbr.rel (%p18) target = $region8
    $region5: #{tpu_custom_call.1} parent=1 // loop_body
      %s22 = ssub.s32 %s17, 1
      %s23 = ssub.s32 %s17, 2
      %s33 = sadd.s32 1, %s26
      %p34 = scmp.ge.s32.totalorder %s33, 1
      %s35 = scalar_select %p34, 0, %s33
      %s36 = sadd.s32 1, %s25
      %s37 = scalar_select %p34, %s36, %s25
      %p38 = scmp.ge.s32.totalorder %s37, 1
      %s39 = scalar_select %p38, 0, %s37
      %s40 = sadd.s32 1, %s24
      %s41 = scalar_select %p38, %s40, %s24
      %p42 = scmp.ge.s32.totalorder %s41, 2
      %s43 = scalar_select %p42, 0, %s41
      %s44 = sadd.s32 %s25, %s26
      %s45 = sadd.s32 %s39, %s35
      %s46 = ssub.s32 %s24, %s43
      %s47 = ssub.s32 %s44, %s45
      %s48 = sor.u32 %s46, %s47
      %p49 = scmp.eq.s32.totalorder %s48, 0
      %s51 = sadd.s32 %s50, 1
      %s52 = scalar_select %p49, %s50, %s51
      %p55 = pneg %p49
      %p56 = scmp.eq.s32.totalorder %s17, 1
      %p57 = por %p55, %p56
      %p58 = scmp.ne.s32.totalorder %s50, %s53
      %p59 = scmp.eq.s32.totalorder %s17, 0
      %p60 = por %p58, %p59
      %p61 = scmp.ne.s32.totalorder %s50, %s53
      %p62 = scmp.eq.s32.totalorder %s22, 1
      %p63 = por %p61, %p62
      %p64 = scmp.ne.s32.totalorder %s53, %s54
      %p65 = scmp.eq.s32.totalorder %s22, 0
      %p66 = por %p64, %p65
      %p67 = scmp.ne.s32.totalorder %s53, %s54
      %p68 = scmp.eq.s32.totalorder %s23, 1
      %p69 = por %p67, %p68
      %p71 = scmp.ne.s32.totalorder %s54, %s70
      %p72 = scmp.eq.s32.totalorder %s23, 0
      %p73 = por %p71, %p72
      %s74 = sadd.s32 %s25, %s26
      %s75 = sadd.s32 %s39, %s35
      %s76 = ssub.s32 %s24, %s43
      %s77 = ssub.s32 %s74, %s75
      %s78 = sor.u32 %s76, %s77
      %p79 = scmp.eq.s32.totalorder %s78, 0
      %s81 = sadd.s32 %s80, 1
      %s82 = scalar_select %p79, %s80, %s81
      %p85 = pneg %p79
      %p86 = scmp.eq.s32.totalorder %s17, 1
      %p87 = por %p85, %p86
      %p88 = scmp.ne.s32.totalorder %s80, %s83
      %p89 = scmp.eq.s32.totalorder %s17, 0
      %p90 = por %p88, %p89
      %p91 = scmp.ne.s32.totalorder %s80, %s83
      %p92 = scmp.eq.s32.totalorder %s22, 1
      %p93 = por %p91, %p92
      %p94 = scmp.ne.s32.totalorder %s83, %s84
      %p95 = scmp.eq.s32.totalorder %s22, 0
      %p96 = por %p94, %p95
      %p97 = scmp.ne.s32.totalorder %s83, %s84
      %p98 = scmp.eq.s32.totalorder %s23, 1
      %p99 = por %p97, %p98
      %p101 = scmp.ne.s32.totalorder %s84, %s100
      %p102 = scmp.eq.s32.totalorder %s23, 0
      %p103 = por %p101, %p102
      %s104 = sadd.s32 %s25, %s26
      %s105 = sadd.s32 %s39, %s35
      %s106 = ssub.s32 %s24, %s43
      %s107 = ssub.s32 %s104, %s105
      %s108 = sor.u32 %s106, %s107
      %p109 = scmp.eq.s32.totalorder %s108, 0
      %s111 = sadd.s32 %s110, 1
      %s112 = scalar_select %p109, %s110, %s111
      %p115 = pneg %p109
      %p116 = scmp.eq.s32.totalorder %s17, 1
      %p117 = por %p115, %p116
      %p118 = scmp.ne.s32.totalorder %s110, %s113
      %p119 = scmp.eq.s32.totalorder %s17, 0
      %p120 = por %p118, %p119
      %p121 = scmp.ne.s32.totalorder %s110, %s113
      %p122 = scmp.eq.s32.totalorder %s22, 1
      %p123 = por %p121, %p122
      %p124 = scmp.ne.s32.totalorder %s113, %s114
      %p125 = scmp.eq.s32.totalorder %s22, 0
      %p126 = por %p124, %p125
      %p127 = scmp.ne.s32.totalorder %s113, %s114
      %p128 = scmp.eq.s32.totalorder %s23, 1
      %p129 = por %p127, %p128
      %p131 = scmp.ne.s32.totalorder %s114, %s130
      %p132 = scmp.eq.s32.totalorder %s23, 0
      %p133 = por %p131, %p132
      %s134 = sadd.s32 %s24, %s25
      %s135 = sadd.s32 %s43, %s39
      %s136 = ssub.s32 %s134, %s135
      %p137 = scmp.eq.s32.totalorder %s136, 0
      %s139 = sadd.s32 %s138, 1
      %s140 = scalar_select %p137, %s138, %s139
      %p143 = pneg %p137
      %p144 = scmp.eq.s32.totalorder %s17, 1
      %p145 = por %p143, %p144
      %p146 = scmp.ne.s32.totalorder %s138, %s141
      %p147 = scmp.eq.s32.totalorder %s17, 0
      %p148 = por %p146, %p147
      %p149 = scmp.ne.s32.totalorder %s138, %s141
      %p150 = scmp.eq.s32.totalorder %s22, 1
      %p151 = por %p149, %p150
      %p152 = scmp.ne.s32.totalorder %s141, %s142
      %p153 = scmp.eq.s32.totalorder %s22, 0
      %p154 = por %p152, %p153
      %p155 = scmp.ne.s32.totalorder %s141, %s142
      %p156 = scmp.eq.s32.totalorder %s23, 1
      %p157 = por %p155, %p156
      %p159 = scmp.ne.s32.totalorder %s142, %s158
      %p160 = scmp.eq.s32.totalorder %s23, 0
      %p161 = por %p159, %p160
      %s162 = sadd.s32 %s24, %s25
      %s163 = sadd.s32 %s43, %s39
      %s164 = ssub.s32 %s162, %s163
      %p165 = scmp.eq.s32.totalorder %s164, 0
      %s167 = sadd.s32 %s166, 1
      %s168 = scalar_select %p165, %s166, %s167
      %p171 = pneg %p165
      %p172 = scmp.eq.s32.totalorder %s17, 1
      %p173 = por %p171, %p172
      %p174 = scmp.ne.s32.totalorder %s166, %s169
      %p175 = scmp.eq.s32.totalorder %s17, 0
      %p176 = por %p174, %p175
      %p177 = scmp.ne.s32.totalorder %s166, %s169
      %p178 = scmp.eq.s32.totalorder %s22, 1
      %p179 = por %p177, %p178
      %p180 = scmp.ne.s32.totalorder %s169, %s170
      %p181 = scmp.eq.s32.totalorder %s22, 0
      %p182 = por %p180, %p181
      %p183 = scmp.ne.s32.totalorder %s169, %s170
      %p184 = scmp.eq.s32.totalorder %s23, 1
      %p185 = por %p183, %p184
      %p187 = scmp.ne.s32.totalorder %s170, %s186
      %p188 = scmp.eq.s32.totalorder %s23, 0
      %p189 = por %p187, %p188
      %p190 = scmp.le.s32.totalorder 1, %s17
      %p191 = scmp.lt.s32.totalorder %s17, 3
      %p192 = pnand %p190, %p191
      %p193 = pneg %p192
      // Predicated region
      $region9: #{tpu_custom_call.1} parent=5 // pred_check
        _
      $region10: #{tpu_custom_call.1} parent=5 // pred_check_branch
        %195 = sbr.rel (%p192) target = $region12
      $region11: #{tpu_custom_call.1} parent=5 // pred_region
        %s196 = ssub.s32 %s17, 1
      $region12: #{tpu_custom_call.1} parent=5 // pred_fallthru
        _
      %p197 = scmp.lt.s32.totalorder %s17, 2
      // Predicated region
      $region13: #{tpu_custom_call.1} parent=5 // pred_check
        %p198 = pneg %p197
      $region14: #{tpu_custom_call.1} parent=5 // pred_check_branch
        %200 = sbr.rel (%p198) target = $region16
      $region15: #{tpu_custom_call.1} parent=5 // pred_region
        // Predicated region
        $region17: #{tpu_custom_call.1} parent=15 // pred_check
          %p201 = pneg %p60
        $region18: #{tpu_custom_call.1} parent=15 // pred_check_branch
          %203 = sbr.rel (%p201) target = $region20
        $region19: #{tpu_custom_call.1} parent=15 // pred_region
          %s204 = sand.u32 %s50, 1
          %s205 = scalar_lea.sflag [#allocation3], %s204
          %s206 = sand.u32 %s50, 1
          %s207 = smul.addr %s206, 8
          %s208 = scalar_lea.vmem [#allocation2], %s207
          %s209 = sadd.s32 %s25, %s26
          %s210 = smul.u32 2, %s209
          %s212 = ssub.s32 128, 128
          %213 = vsyncadd %s205, %s212
          %s214 = smul.addr %s24, 2
          %s215 = sadd.s32 %s210, %s214
          %s216 = smul.addr %s215, 64
          %s217 = scalar_lea.hbm %s0, %s216
          %s219 = sshll.u32 %s208, 4
          %s220 = int_to_ptr.vmem [resolvable:$true] %s219
          %222 = dma.hbm_to_vmem [thread:$0]  %s217, 128, %s220, %s205
        $region20: #{tpu_custom_call.1} parent=15 // pred_fallthru
          _
        // Predicated region
        $region21: #{tpu_custom_call.1} parent=15 // pred_check
          %p223 = pneg %p90
        $region22: #{tpu_custom_call.1} parent=15 // pred_check_branch
          %225 = sbr.rel (%p223) target = $region24
        $region23: #{tpu_custom_call.1} parent=15 // pred_region
          %s226 = sand.u32 %s80, 1
          %s227 = scalar_lea.sflag [#allocation5], %s226
          %s228 = sand.u32 %s80, 1
          %s229 = smul.addr %s228, 8
          %s230 = scalar_lea.vmem [#allocation4], %s229
          %s231 = sadd.s32 %s25, %s26
          %s232 = smul.u32 2, %s231
          %s234 = ssub.s32 128, 128
          %235 = vsyncadd %s227, %s234
          %s236 = smul.addr %s24, 2
          %s237 = sadd.s32 %s232, %s236
          %s238 = smul.addr %s237, 64
          %s239 = scalar_lea.hbm %s1, %s238
          %s241 = sshll.u32 %s230, 4
          %s242 = int_to_ptr.vmem [resolvable:$true] %s241
          %244 = dma.hbm_to_vmem [thread:$0]  %s239, 128, %s242, %s227
        $region24: #{tpu_custom_call.1} parent=15 // pred_fallthru
          _
        // Predicated region
        $region25: #{tpu_custom_call.1} parent=15 // pred_check
          %p245 = pneg %p120
        $region26: #{tpu_custom_call.1} parent=15 // pred_check_branch
          %247 = sbr.rel (%p245) target = $region28
        $region27: #{tpu_custom_call.1} parent=15 // pred_region
          %s248 = sadd.s32 %s25, %s26
          %s249 = smul.u32 2, %s248
          %p250 = scmp.lt.s32.totalorder %s24, 1
          %s251 = scalar_select %p250, %s24, 1
          %p252 = scmp.lt.s32.totalorder %s249, 1
          %s253 = scalar_select %p252, %s249, 1
          %s254 = smul.addr %s251, 2
          %s255 = sadd.s32 %s253, %s254
          %s256 = scalar_lea.vmem %s2, %s255
          %s257 = sadd.s32 %s25, %s26
          %s258 = smul.u32 2, %s257
        $region28: #{tpu_custom_call.1} parent=15 // pred_fallthru
          _
      $region16: #{tpu_custom_call.1} parent=5 // pred_fallthru
        _
      %p259 = scmp.le.s32.totalorder 1, %s17
      %p260 = scmp.lt.s32.totalorder %s17, 3
      %p261 = pnand %p259, %p260
      %p262 = pneg %p261
      // Predicated region
      $region29: #{tpu_custom_call.1} parent=5 // pred_check
        _
      $region30: #{tpu_custom_call.1} parent=5 // pred_check_branch
        %264 = sbr.rel (%p261) target = $region32
      $region31: #{tpu_custom_call.1} parent=5 // pred_region
        %s265 = ssub.s32 %s17, 1
        %s266 = sand.u32 %s53, 1
        %s267 = scalar_lea.sflag [#allocation3], %s266
        %s268 = sand.u32 %s53, 1
        %s269 = smul.addr %s268, 8
        %s270 = scalar_lea.vmem [#allocation2], %s269
        // Predicated region
        $region33: #{tpu_custom_call.1} parent=31 // pred_check
          %p271 = pneg %p66
        $region34: #{tpu_custom_call.1} parent=31 // pred_check_branch
          %273 = sbr.rel (%p271) target = $region36
        $region35: #{tpu_custom_call.1} parent=31 // pred_region
          %274 = dma.done %s267, 128
        $region36: #{tpu_custom_call.1} parent=31 // pred_fallthru
          _
        %s275 = sand.u32 %s83, 1
        %s276 = scalar_lea.sflag [#allocation5], %s275
        %s277 = sand.u32 %s83, 1
        %s278 = smul.addr %s277, 8
        %s279 = scalar_lea.vmem [#allocation4], %s278
        // Predicated region
        $region37: #{tpu_custom_call.1} parent=31 // pred_check
          %p280 = pneg %p96
        $region38: #{tpu_custom_call.1} parent=31 // pred_check_branch
          %282 = sbr.rel (%p280) target = $region40
        $region39: #{tpu_custom_call.1} parent=31 // pred_region
          %283 = dma.done %s276, 128
        $region40: #{tpu_custom_call.1} parent=31 // pred_fallthru
          _
        %s284 = sand.u32 %s53, 1
        %s285 = scalar_lea.sflag [#allocation3], %s284
        %s286 = sand.u32 %s53, 1
        %s287 = smul.addr %s286, 8
        %s288 = scalar_lea.vmem [#allocation2], %s287
        %p289 = pneg %p66
        %p290 = pneg %p63
        %s291 = sand.u32 %s83, 1
        %s292 = scalar_lea.sflag [#allocation5], %s291
        %s293 = sand.u32 %s83, 1
        %s294 = smul.addr %s293, 8
        %s295 = scalar_lea.vmem [#allocation4], %s294
        %p296 = pneg %p96
        %p297 = pneg %p93
        %s298 = sadd.s32 %s28, %s29
        %s299 = smul.u32 2, %s298
        %p300 = scmp.lt.s32.totalorder %s27, 1
        %s301 = scalar_select %p300, %s27, 1
        %p302 = scmp.lt.s32.totalorder %s299, 1
        %s303 = scalar_select %p302, %s299, 1
        %s304 = smul.addr %s301, 2
        %s305 = sadd.s32 %s303, %s304
        %s306 = scalar_lea.vmem %s2, %s305
        %p307 = pneg %p126
        %p308 = pneg %p123
        %p309 = pneg %p154
        %p310 = pneg %p151
        %s311 = sadd.s32 %s27, %s28
        %p312 = scmp.lt.s32.totalorder %s311, 1
        %s313 = scalar_select %p312, %s311, 1
        %s314 = scalar_lea.vmem %s3, %s313
        %p315 = pneg %p182
        %p316 = pneg %p179
        %s317 = sadd.s32 %s27, %s28
        %p318 = scmp.lt.s32.totalorder %s317, 1
        %s319 = scalar_select %p318, %s317, 1
        %s320 = scalar_lea.vmem %s4, %s319
        %s321 = sadd.s32 %s28, %s29
        %s322 = smul.u32 2, %s321
        %s323 = sadd.s32 %s28, %s29
        %s324 = smul.u32 2, %s323
        %s325 = sadd.s32 %s28, %s29
        %s326 = smul.u32 2, %s325
        %p327 = scmp.lt.s32.totalorder %s27, 1
        %s328 = scalar_select %p327, %s27, 1
        %p329 = scmp.lt.s32.totalorder %s326, 1
        %s330 = scalar_select %p329, %s326, 1
        %s331 = smul.addr %s328, 2
        %s332 = sadd.s32 %s330, %s331
        %s333 = scalar_lea.vmem %s2, %s332
        %s334 = sadd.s32 %s28, %s29
        %s335 = smul.u32 2, %s334
        %s336 = sadd.s32 %s27, %s28
        %p337 = scmp.lt.s32.totalorder %s336, 1
        %s338 = scalar_select %p337, %s336, 1
        %s339 = scalar_lea.vmem %s3, %s338
        %s340 = sadd.s32 %s27, %s28
        %s341 = sadd.s32 %s27, %s28
        %p342 = scmp.lt.s32.totalorder %s341, 1
        %s343 = scalar_select %p342, %s341, 1
        %s344 = scalar_lea.vmem %s4, %s343
        %s345 = sadd.s32 %s27, %s28
        %s346 = sadd.s32 %s28, %s29
        %p347 = scmp.eq.s32.totalorder %s29, 0
        // Predicated region
        $region41: #{tpu_custom_call.1} parent=31 // pred_check
          %p348 = pneg %p347
        $region42: #{tpu_custom_call.1} parent=31 // pred_check_branch
          %350 = sbr.rel (%p348) target = $region44
        $region43: #{tpu_custom_call.1} parent=31 // pred_region
          %vm351 = vcmask 0
          %352 = vst.msk [vmem:[%s339] sm:$0x1] %vm351, 0.0
          %353 = vst.msk [vmem:[%s344] sm:$0x1] %vm351, 0.0
        $region44: #{tpu_custom_call.1} parent=31 // pred_fallthru
          _
        %v354 = vld [vmem:[%s270] sm:$0xff]
        %v355 = vld [vmem:[%s279] sm:$0xff]
        %v356 = vld [vmem:[%s333] sm:$0x3]
        %v357 = vlaneseq
        %v358 = vand.u32 %v357, 127
        %v359 = vadd.s32 %v358, 128
        %s360 = smul.u32 %s346, 256
        %v361 = vstv %s360
        %v362 = vadd.s32 %v361, %v358
        %v363 = vadd.s32 %v361, %v359
        %vm364 = vcmp.lt.s32.totalorder %v362, 256
        %vm365 = vcmp.lt.s32.totalorder %v363, 256
        %v367 = vcombine.high %v354, %v354
        %vm369 = vcmask 1043456
        %v370 = vsel %vm369, %v354, -inf
        %v371 = vrot.slane %v370, 4
        %v372 = vmax.f32 %v370, %v371
        %v373 = vrot.slane %v372, 2
        %v374 = vmax.f32 %v372, %v373
        %v375 = vrot.slane %v374, 1
        %v376 = vmax.f32 %v374, %v375
        %v377 = vsel %vm369, %v367, -inf
        %v378 = vrot.slane %v377, 4
        %v379 = vmax.f32 %v377, %v378
        %v380 = vrot.slane %v379, 2
        %v381 = vmax.f32 %v379, %v380
        %v382 = vrot.slane %v381, 1
        %v383 = vmax.f32 %v381, %v382
        %v385 = vcombine.high %v355, %v355
        %v387 = vsel %vm369, %v355, -inf
        %v388 = vrot.slane %v387, 4
        %v389 = vmax.f32 %v387, %v388
        %v390 = vrot.slane %v389, 2
        %v391 = vmax.f32 %v389, %v390
        %v392 = vrot.slane %v391, 1
        %v393 = vmax.f32 %v391, %v392
        %v394 = vsel %vm369, %v385, -inf
        %v395 = vrot.slane %v394, 4
        %v396 = vmax.f32 %v394, %v395
        %v397 = vrot.slane %v396, 2
        %v398 = vmax.f32 %v396, %v397
        %v399 = vrot.slane %v398, 1
        %v400 = vmax.f32 %v398, %v399
        %v403 = vcombine.low %v376, %v383
        %v405 = vsub.f32 %v354, %v403
        %v406 = vmul.f32 %v405, 0.5
        %v407 = vmul.f32 %v406, 1.442695
        %v408 = vpow.pop %v407
        %v411 = vcombine.low %v393, %v400
        %v413 = vsub.f32 %v355, %v411
        %v414 = vmul.f32 %v413, 1.442695
        %v415 = vpow.pop %v414
        %v416 = vmul.f32 %v408, %v408
        %v417 = vmul.f32 %v408, %v415
        %v419 = vcombine.high %v416, %v416
        %v421 = vsel %vm369, %v416, 0.0
        %v422 = vrot.slane %v421, 4
        %v423 = vadd.f32 %v421, %v422
        %v424 = vrot.slane %v423, 2
        %v425 = vadd.f32 %v423, %v424
        %v426 = vrot.slane %v425, 1
        %v427 = vadd.f32 %v425, %v426
        %v428 = vsel %vm369, %v419, 0.0
        %v429 = vrot.slane %v428, 4
        %v430 = vadd.f32 %v428, %v429
        %v431 = vrot.slane %v430, 2
        %v432 = vadd.f32 %v430, %v431
        %v433 = vrot.slane %v432, 1
        %v434 = vadd.f32 %v432, %v433
        %v436 = vcombine.high %v415, %v415
        %v438 = vsel %vm369, %v415, 0.0
        %v439 = vrot.slane %v438, 4
        %v440 = vadd.f32 %v438, %v439
        %v441 = vrot.slane %v440, 2
        %v442 = vadd.f32 %v440, %v441
        %v443 = vrot.slane %v442, 1
        %v444 = vadd.f32 %v442, %v443
        %v445 = vsel %vm369, %v436, 0.0
        %v446 = vrot.slane %v445, 4
        %v447 = vadd.f32 %v445, %v446
        %v448 = vrot.slane %v447, 2
        %v449 = vadd.f32 %v447, %v448
        %v450 = vrot.slane %v449, 1
        %v451 = vadd.f32 %v449, %v450
        %v453 = vcombine.high %v417, %v417
        %v455 = vsel %vm369, %v417, 0.0
        %v456 = vrot.slane %v455, 4
        %v457 = vadd.f32 %v455, %v456
        %v458 = vrot.slane %v457, 2
        %v459 = vadd.f32 %v457, %v458
        %v460 = vrot.slane %v459, 1
        %v461 = vadd.f32 %v459, %v460
        %v462 = vsel %vm369, %v453, 0.0
        %v463 = vrot.slane %v462, 4
        %v464 = vadd.f32 %v462, %v463
        %v465 = vrot.slane %v464, 2
        %v466 = vadd.f32 %v464, %v465
        %v467 = vrot.slane %v466, 1
        %v468 = vadd.f32 %v466, %v467
        %v469 = vmul.f32 %v417, %v355
        %v471 = vcombine.high %v469, %v469
        %v473 = vsel %vm369, %v469, 0.0
        %v474 = vrot.slane %v473, 4
        %v475 = vadd.f32 %v473, %v474
        %v476 = vrot.slane %v475, 2
        %v477 = vadd.f32 %v475, %v476
        %v478 = vrot.slane %v477, 1
        %v479 = vadd.f32 %v477, %v478
        %v480 = vsel %vm369, %v471, 0.0
        %v481 = vrot.slane %v480, 4
        %v482 = vadd.f32 %v480, %v481
        %v483 = vrot.slane %v482, 2
        %v484 = vadd.f32 %v482, %v483
        %v485 = vrot.slane %v484, 1
        %v486 = vadd.f32 %v484, %v485
        %v487 = vrcp.pop %v461
        %v488 = vmul.f32 %v479, %v487
        %v489 = vrcp.pop %v468
        %v490 = vmul.f32 %v486, %v489
        %v491 = vlog2.pop %v427
        %v492 = vmul.f32 %v491, 0.6931472
        %v493 = vlog2.pop %v434
        %v494 = vmul.f32 %v493, 0.6931472
        %v495 = vadd.f32 %v488, %v492
        %v496 = vadd.f32 %v490, %v494
        %v497 = vlog2.pop %v444
        %v498 = vmul.f32 %v497, 0.6931472
        %v499 = vlog2.pop %v451
        %v500 = vmul.f32 %v499, 0.6931472
        %v501 = vadd.f32 %v495, %v498
        %v502 = vadd.f32 %v496, %v500
        %v503 = vsub.f32 %v501, %v393
        %v504 = vsub.f32 %v502, %v400
        %v505 = vlog2.pop %v461
        %v506 = vmul.f32 %v505, 0.6931472
        %v507 = vlog2.pop %v468
        %v508 = vmul.f32 %v507, 0.6931472
        %v509 = vmul.f32 %v506, 2.0
        %v510 = vmul.f32 %v508, 2.0
        %v511 = vsub.f32 %v503, %v509
        %v512 = vsub.f32 %v504, %v510
        %v513 = vsel %vm364, %v511, 0.0
        %v514 = vsel %vm365, %v512, 0.0
        %v515 = vlaneseq
        %v516 = vshrl.u32 %v515, 7
        %v517 = vlaneseq
        %v518 = vshrl.u32 %v517, 7
        %v519 = vsub.s32 0, %v518
        %v520 = vrot.slane %v356, %v519
        %v521 = vlaneseq
        %v522 = vshrl.u32 %v521, 7
        %v523 = vsub.s32 1, %v522
        %v524 = vrot.slane %v356, %v523
        %vm525 = vcmp.eq.s32.totalorder %v516, %v520
        %vm526 = vcmp.eq.s32.totalorder %v516, %v524
        %v527 = vsel %vm525, 1, 0
        %v528 = vsel %vm526, 1, 0
        %v529 = vcvt.s32.f32 %v527
        %v530 = vcvt.s32.f32 %v528
        %v533 = vcombine.low %v529, %v530
        %v535 = vmul.f32 %v354, %v533
        %v537 = vcombine.high %v535, %v535
        %v539 = vsel %vm369, %v535, 0.0
        %v540 = vrot.slane %v539, 4
        %v541 = vadd.f32 %v539, %v540
        %v542 = vrot.slane %v541, 2
        %v543 = vadd.f32 %v541, %v542
        %v544 = vrot.slane %v543, 1
        %v545 = vadd.f32 %v543, %v544
        %v546 = vsel %vm369, %v537, 0.0
        %v547 = vrot.slane %v546, 4
        %v548 = vadd.f32 %v546, %v547
        %v549 = vrot.slane %v548, 2
        %v550 = vadd.f32 %v548, %v549
        %v551 = vrot.slane %v550, 1
        %v552 = vadd.f32 %v550, %v551
        %v553 = vadd.f32 %v376, %v492
        %v554 = vadd.f32 %v383, %v494
        %v555 = vsub.f32 %v553, %v545
        %v556 = vsub.f32 %v554, %v552
        %vm557 = vcmp.ne.s32.totalorder %v356, 255
        %v558 = vsel %vm364, 1, 0
        %v559 = vsel %vm365, 1, 0
        %v560 = vcombine.low %v558, %v559
        %v562 = vunpack.c.l.s4 1966171168
        %v563 = vunpack.c.0.s8 %v562
        %v564 = vlaneseq
        %v565 = vshrl.u32 %v564, 7
        %v566 = vsub.s32 %v563, %v565
        %v567 = vrot.slane %v560, %v566
        %v569 = vunpack.c.l.s4 1966171168
        %v570 = vunpack.c.0.s8 %v569
        %v571 = vlaneseq
        %v572 = vshrl.u32 %v571, 7
        %v573 = vsub.s32 %v570, %v572
        %v574 = vrot.slane %v567, %v573
        %vm575 = vcmp.ne.s32.totalorder %v574, 0
        %vm576 = vmand %vm557, %vm575
        %v579 = vcombine.low %v555, %v556
        %v581 = vunpack.c.l.s4 1966171168
        %v582 = vunpack.c.0.s8 %v581
        %v583 = vlaneseq
        %v584 = vshrl.u32 %v583, 7
        %v585 = vsub.s32 %v582, %v584
        %v586 = vrot.slane %v579, %v585
        %v588 = vunpack.c.l.s4 1966171168
        %v589 = vunpack.c.0.s8 %v588
        %v590 = vlaneseq
        %v591 = vshrl.u32 %v590, 7
        %v592 = vsub.s32 %v589, %v591
        %v593 = vrot.slane %v586, %v592
        %v595 = vsel %vm576, %v593, 0.0
        %v596 = vld [vmem:[%s339] sm:$0x1]
        %v597 = vadd.f32 %v513, %v514
        %598 = vadd.xlane.f32.xlu0 %v597
        %v599 = vpop.xlane.xlu0 %598
        %v600 = vadd.f32 %v596, %v599
        %vm601 = vcmask 0
        %602 = vst.msk [vmem:[%s339] sm:$0x1] %vm601, %v600
        %v603 = vld [vmem:[%s344] sm:$0x1]
        %v605 = vlaneseq
        %v606 = vshrl.u32 %v605, 7
        %v607 = vsub.s32 0, %v606
        %v608 = vrot.slane %v595, %v607
        %v609 = vlaneseq
        %v610 = vshrl.u32 %v609, 7
        %v611 = vsub.s32 1, %v610
        %v612 = vrot.slane %v595, %v611
        %vm615 = vcmask 1040384
        %v616 = vsel %vm615, %v608, 0.0
        %v617 = vsel %vm615, %v612, 0.0
        %v618 = vadd.f32 %v616, %v617
        %619 = vadd.xlane.f32.xlu0 %v618
        %v620 = vpop.xlane.xlu0 %619
        %v621 = vadd.f32 %v603, %v620
        %622 = vst.msk [vmem:[%s344] sm:$0x1] %vm601, %v621
        %s623 = sadd.s32 %s27, %s28
        %p624 = scmp.lt.s32.totalorder %s623, 1
        %s625 = scalar_select %p624, %s623, 1
        %s626 = scalar_lea.vmem %s3, %s625
        %s627 = sadd.s32 %s27, %s28
        %p628 = scmp.lt.s32.totalorder %s627, 1
        %s629 = scalar_select %p628, %s627, 1
        %s630 = scalar_lea.vmem %s4, %s629
        // Predicated region
        $region45: #{tpu_custom_call.1} parent=31 // pred_check
          %p631 = pneg %p151
        $region46: #{tpu_custom_call.1} parent=31 // pred_check_branch
          %633 = sbr.rel (%p631) target = $region48
        $region47: #{tpu_custom_call.1} parent=31 // pred_region
          %s634 = sadd.s32 %s27, %s28
        $region48: #{tpu_custom_call.1} parent=31 // pred_fallthru
          _
        // Predicated region
        $region49: #{tpu_custom_call.1} parent=31 // pred_check
          %p635 = pneg %p179
        $region50: #{tpu_custom_call.1} parent=31 // pred_check_branch
          %637 = sbr.rel (%p635) target = $region52
        $region51: #{tpu_custom_call.1} parent=31 // pred_region
          %s638 = sadd.s32 %s27, %s28
        $region52: #{tpu_custom_call.1} parent=31 // pred_fallthru
          _
      $region32: #{tpu_custom_call.1} parent=5 // pred_fallthru
        _
      %p639 = scmp.le.s32.totalorder 2, %s17
      // Predicated region
      $region53: #{tpu_custom_call.1} parent=5 // pred_check
        %p640 = pneg %p639
      $region54: #{tpu_custom_call.1} parent=5 // pred_check_branch
        %642 = sbr.rel (%p640) target = $region56
      $region55: #{tpu_custom_call.1} parent=5 // pred_region
        %s643 = ssub.s32 %s17, 2
        // Predicated region
        $region57: #{tpu_custom_call.1} parent=55 // pred_check
          %p644 = pneg %p157
        $region58: #{tpu_custom_call.1} parent=55 // pred_check_branch
          %646 = sbr.rel (%p644) target = $region60
        $region59: #{tpu_custom_call.1} parent=55 // pred_region
          %s647 = sadd.s32 %s30, %s31
          %p648 = scmp.lt.s32.totalorder %s647, 1
          %s649 = scalar_select %p648, %s647, 1
          %s650 = scalar_lea.vmem %s3, %s649
        $region60: #{tpu_custom_call.1} parent=55 // pred_fallthru
          _
        // Predicated region
        $region61: #{tpu_custom_call.1} parent=55 // pred_check
          %p651 = pneg %p185
        $region62: #{tpu_custom_call.1} parent=55 // pred_check_branch
          %653 = sbr.rel (%p651) target = $region64
        $region63: #{tpu_custom_call.1} parent=55 // pred_region
          %s654 = sadd.s32 %s30, %s31
          %p655 = scmp.lt.s32.totalorder %s654, 1
          %s656 = scalar_select %p655, %s654, 1
          %s657 = scalar_lea.vmem %s4, %s656
        $region64: #{tpu_custom_call.1} parent=55 // pred_fallthru
          _
      $region56: #{tpu_custom_call.1} parent=5 // pred_fallthru
        _
    $region6: #{tpu_custom_call.1} parent=1 // loop_footer
      %s21 = sadd.s32 1, %s17
    $region7: #{tpu_custom_call.1} parent=1 // loop_footer_branch
      %16 = sbr.rel target = $region3
    $region8: #{tpu_custom_call.1} parent=1 // loop_exit
      _
    %658 = vsyncpa [#allocation3], 1
    %s659 = scalar_lea.sflag [#allocation3], 1
    %660 = vsyncpa %s659, 1
    %661 = vsyncpa [#allocation5], 1
    %s662 = scalar_lea.sflag [#allocation5], 1
    %663 = vsyncpa %s662, 1

</llo_original>
